<compile_context>
chip_gen: v6e
topology: v6e:2x2x1
jax: 0.10.0
libtpu: 0.0.40
codegen_flags: <defaults>
</compile_context>

<pallas_src>
import jax
import jax.numpy as jnp
from jax.experimental import pallas as pl
from jax.experimental.pallas import tpu as pltpu


def _round_up(v, m):
    return (v + m - 1) // m * m


def _patch_embed_kernel(patch_ref, w_ref, pos_ref, out_ref):
    # patch_ref: (tm, Kp)        flattened patch pixels (K zero-padded, maybe bf16)
    # w_ref:     (Kp, Np)        conv weight reshaped/transposed (K/N zero-padded)
    # pos_ref:   (tm, Np)        (pos_emb[1:] + conv_bias), pre-tiled per M tile, f32
    # out_ref:   (tm, Np)
    acc = jnp.dot(patch_ref[...], w_ref[...], preferred_element_type=jnp.float32)
    out_ref[...] = (acc + pos_ref[...]).astype(out_ref.dtype)


def embeddings_forward(x, conv_w, conv_b, cls_tok, pos_emb, patch_size,
                       *, matmul_dtype=None, target_m_rows=256):
    """x: (B, C, H, W) NCHW.  Returns (B, n_patches + 1, hidden)."""
    B, C, H, W = x.shape
    p = patch_size
    hp, wp = H // p, W // p
    n_patches = hp * wp
    hidden = conv_w.shape[0]
    d_in = C * p * p
    out_dtype = x.dtype

    if matmul_dtype is not None:
        # Cast before the patch-extraction transpose so the materialized
        # intermediate is half the bytes; accumulation stays f32 in-kernel.
        x = x.astype(matmul_dtype)
        conv_w = conv_w.astype(matmul_dtype)

    # Patch extraction (glue).  Flatten each patch in (C, kh, kw) order to match
    # the PyTorch Conv2d weight layout (O, C, kh, kw).
    patches = x.reshape(B, C, hp, p, wp, p)
    patches = patches.transpose(0, 2, 4, 1, 3, 5).reshape(B, n_patches, d_in)

    # M tiling: k whole batches per tile so the positional-embedding rows repeat
    # identically in every tile; ensure tm is a multiple of 8 (sublane).
    # target_m_rows ~256 suits v6e/v7x (2x256 MXU); 128 is fine for v5e.
    k = min(B, max(1, target_m_rows // n_patches))
    while (k * n_patches) % 8 != 0:
        k += 1
    tm = k * n_patches
    grid_m = -(-B // k)
    b_pad = grid_m * k
    mp = b_pad * n_patches

    # Pad contraction dim K and output dim N to multiples of 128.
    kp = _round_up(d_in, 128)
    npad = _round_up(hidden, 128)

    patches = jnp.pad(patches, ((0, b_pad - B), (0, 0), (0, kp - d_in)))
    patches_flat = patches.reshape(mp, kp)

    w2d = conv_w.reshape(hidden, d_in).T                       # (d_in, hidden)
    w2d = jnp.pad(w2d, ((0, kp - d_in), (0, npad - hidden)))   # (Kp, Np)

    # Fold conv bias into the positional embedding; cls row handled in wrapper.
    pos_f32 = pos_emb.astype(jnp.float32)
    bias_f32 = conv_b.astype(jnp.float32)
    pos_plus_b = pos_f32[1:] + bias_f32[None, :]               # (n_patches, hidden)
    pos_plus_b = jnp.pad(pos_plus_b, ((0, 0), (0, npad - hidden)))
    pos_tile = jnp.tile(pos_plus_b, (k, 1))                    # (tm, Np)
    cls_row = cls_tok.reshape(-1).astype(jnp.float32) + pos_f32[0]

    flops = 2 * mp * kp * npad
    bytes_accessed = (patches_flat.size * patches_flat.dtype.itemsize
                      + w2d.size * w2d.dtype.itemsize
                      + pos_tile.size * 4
                      + mp * npad * jnp.dtype(out_dtype).itemsize)

    out_flat = pl.pallas_call(
        _patch_embed_kernel,
        out_shape=jax.ShapeDtypeStruct((mp, npad), out_dtype),
        grid=(grid_m,),
        in_specs=[
            pl.BlockSpec((tm, kp), lambda i: (i, 0)),
            pl.BlockSpec((kp, npad), lambda i: (0, 0)),    # resident weight
            pl.BlockSpec((tm, npad), lambda i: (0, 0)),    # resident pos+bias tile
        ],
        out_specs=pl.BlockSpec((tm, npad), lambda i: (i, 0)),
        compiler_params=pltpu.CompilerParams(
            dimension_semantics=("parallel",)),
        cost_estimate=pl.CostEstimate(flops=flops, transcendentals=0,
                                      bytes_accessed=bytes_accessed),
    )(patches_flat, w2d, pos_tile)

    # Wrapper glue: drop padding, restore (B, n_patches, hidden), prepend cls row.
    patch_tokens = out_flat[:B * n_patches, :hidden].reshape(B, n_patches, hidden)
    cls = jnp.broadcast_to(cls_row.astype(out_dtype)[None, None, :hidden],
                           (B, 1, hidden))
    return jnp.concatenate([cls, patch_tokens], axis=1)


def _reference_forward(x, conv_w, conv_b, cls_tok, pos_emb, patch_size):
    """Pure-JAX reference mirroring the PyTorch forward exactly (eval mode)."""
    B = x.shape[0]
    y = jax.lax.conv_general_dilated(
        x, conv_w, window_strides=(patch_size, patch_size), padding="VALID",
        dimension_numbers=("NCHW", "OIHW", "NCHW"))
    y = y + conv_b.reshape(1, -1, 1, 1)
    y = y.reshape(B, y.shape[1], -1)            # flatten(2)
    y = jnp.swapaxes(y, -1, -2)                 # transpose(-1, -2)
    cls = jnp.broadcast_to(cls_tok.reshape(1, 1, -1), (B, 1, cls_tok.shape[-1]))
    y = jnp.concatenate([cls, y], axis=1)
    return y + pos_emb[None]                    # Learnable_embedding: x + pos


if __name__ == "__main__":
    # Synthetic "config": img_size=16, patch=4, hidden_state=32, in_channels=3
    img_size, patch_size, hidden, in_channels, batch = 16, 4, 32, 3, 2
    n_patches = (img_size // patch_size) * (img_size // patch_size)

    key = jax.random.PRNGKey(0)
    kx, kw, kb, kp = jax.random.split(key, 4)

    x = jax.random.normal(kx, (batch, in_channels, img_size, img_size),
                          dtype=jnp.float32)
    # Conv2d(in_channels, hidden, kernel=patch, stride=patch) parameters
    fan_in = in_channels * patch_size * patch_size
    conv_w = jax.random.normal(kw, (hidden, in_channels, patch_size, patch_size),
                               dtype=jnp.float32) * (1.0 / fan_in ** 0.5)
    conv_b = jax.random.uniform(kb, (hidden,), dtype=jnp.float32,
                                minval=-0.1, maxval=0.1)
    # classifier token is initialized to zeros in the PyTorch module
    cls_tok = jnp.zeros((hidden,), dtype=jnp.float32)
    # learnable positional embedding (n_patches + 1 positions)
    pos_emb = jax.random.normal(kp, (n_patches + 1, hidden),
                                dtype=jnp.float32) * 0.02
    # TODO(synk): dropout (inside Learnable_embedding) and the 'sinu' pe_type
    # branch are not modeled; this implements eval-mode learnable embeddings.

    ref = _reference_forward(x, conv_w, conv_b, cls_tok, pos_emb, patch_size)

    # f32 path: exact-tolerance check.
    out = embeddings_forward(x, conv_w, conv_b, cls_tok, pos_emb, patch_size)
    out = jax.block_until_ready(out)
    assert out.shape == (batch, n_patches + 1, hidden), out.shape
    assert jnp.allclose(out, ref, atol=1e-5, rtol=1e-5), "f32 mismatch vs ref"

    # bf16 MXU-input path (f32 accumulate + f32 epilogue): looser tolerance.
    out_bf16 = embeddings_forward(x, conv_w, conv_b, cls_tok, pos_emb,
                                  patch_size, matmul_dtype=jnp.bfloat16)
    out_bf16 = jax.block_until_ready(out_bf16)
    assert out_bf16.shape == (batch, n_patches + 1, hidden), out_bf16.shape
    assert jnp.allclose(out_bf16, ref, atol=5e-2, rtol=5e-2), "bf16 mismatch"

    print("KERNEL_OK")
</pallas_src>

<mosaic_0001>
module attributes {stable_mosaic.version = 11 : i64} {
  func.func @_patch_embed_kernel(%arg0: i32, %arg1: memref<32x128xf32, #tpu.memory_space<vmem>>, %arg2: memref<128x128xf32, #tpu.memory_space<vmem>>, %arg3: memref<32x128xf32, #tpu.memory_space<vmem>>, %arg4: memref<32x128xf32, #tpu.memory_space<vmem>>) attributes {dimension_semantics = [#tpu.dimension_semantics<parallel>], iteration_bounds = array<i64: 1>, scalar_prefetch = 0 : i64, scratch_operands = 0 : i64, tpu.core_type = #tpu.core_type<tc>, window_params = [{transform_indices = @transform_0, window_bounds = array<i64: 32, 128>}, {pipeline_mode = #tpu.pipeline_mode<synchronous>, transform_indices = @transform_1, window_bounds = array<i64: 128, 128>}, {pipeline_mode = #tpu.pipeline_mode<synchronous>, transform_indices = @transform_2, window_bounds = array<i64: 32, 128>}, {transform_indices = @transform_3, window_bounds = array<i64: 32, 128>}]} {
    %c0 = arith.constant 0 : index
    %c0_0 = arith.constant 0 : index
    %0 = vector.load %arg1[%c0, %c0_0] : memref<32x128xf32, #tpu.memory_space<vmem>>, vector<32x128xf32>
    %c0_1 = arith.constant 0 : index
    %c0_2 = arith.constant 0 : index
    %1 = vector.load %arg2[%c0_1, %c0_2] : memref<128x128xf32, #tpu.memory_space<vmem>>, vector<128x128xf32>
    %cst = arith.constant dense<0.000000e+00> : vector<32x128xf32>
    %2 = tpu.matmul %0, %1, %cst {dimension_numbers = #tpu.dot_dimension_numbers<[1], [0], [0], [1], [0, 0, 1, 1], [], []>} : vector<32x128xf32>, vector<128x128xf32>, vector<32x128xf32> -> vector<32x128xf32>
    %c0_3 = arith.constant 0 : index
    %c0_4 = arith.constant 0 : index
    %3 = vector.load %arg3[%c0_3, %c0_4] : memref<32x128xf32, #tpu.memory_space<vmem>>, vector<32x128xf32>
    %4 = arith.addf %2, %3 : vector<32x128xf32>
    %c0_5 = arith.constant 0 : index
    %c0_6 = arith.constant 0 : index
    %5 = vector.load %arg4[%c0_5, %c0_6] : memref<32x128xf32, #tpu.memory_space<vmem>>, vector<32x128xf32>
    tpu.vector_store %arg4[%c0_5, %c0_6], %4 {strides = array<i32>} : memref<32x128xf32, #tpu.memory_space<vmem>>, vector<32x128xf32>,
    return
  }
  func.func @transform_0(%arg0: i32) -> (i32, i32) {
    %c0_i32 = arith.constant 0 : i32
    %c0_i32_0 = arith.constant 0 : i32
    return %arg0, %c0_i32 : i32, i32
  }
  func.func @transform_1(%arg0: i32) -> (i32, i32) {
    %c0_i32 = arith.constant 0 : i32
    %c0_i32_0 = arith.constant 0 : i32
    %c0_i32_1 = arith.constant 0 : i32
    return %c0_i32, %c0_i32_0 : i32, i32
  }
  func.func @transform_2(%arg0: i32) -> (i32, i32) {
    %c0_i32 = arith.constant 0 : i32
    %c0_i32_0 = arith.constant 0 : i32
    %c0_i32_1 = arith.constant 0 : i32
    return %c0_i32, %c0_i32_0 : i32, i32
  }
  func.func @transform_3(%arg0: i32) -> (i32, i32) {
    %c0_i32 = arith.constant 0 : i32
    %c0_i32_0 = arith.constant 0 : i32
    return %arg0, %c0_i32 : i32, i32
  }
}

</mosaic_0001>

<llo_original>
// kernel: tpu_custom_call.1
$region0: #{tpu_custom_call.1}
  #allocation0 [shape = 'u32[]', space=smem, size = 0x4, offset = 0x4, fixed_abs, tag = 'smem constant byte address 0x4 - core index']
  #allocation1 [shape = 'u32[144,128]{1,0:T(1,128)}', space=vmem, size = 0x12000, scoped, tag = 'internal scratch']
  %s0 = inlined_call_operand.hbm [shape: f32[32,128], index: 0, kind: input, shape index: {}]
  %s1 = inlined_call_operand.hbm [shape: f32[128,128], index: 1, kind: input, shape index: {}]
  %s2 = inlined_call_operand.hbm [shape: f32[32,128], index: 2, kind: input, shape index: {}]
  %s3 = inlined_call_operand.hbm [shape: f32[32,128], index: 3, kind: output, shape index: {}]
  %s4 = sld [smem:[#allocation0]]
  $region34: #{tpu_custom_call.1} parent=0
    _
  %s6 = ssub.s32 1, %s4
  %s7 = scalar_select 0, %s6, %s4
  $region1: #{tpu_custom_call.1} parent=0
    #allocation2 [shape = 'u8[16384]{0}', space=vmem, size = 0x4000, scoped, tag = 'input window, operand 0, single buffered']
    #allocation3 [shape = 's32[1]{0}', space=sflag, size = 0x4, scoped, tag = 'scoped memory for tpu_custom_call.1']
    #allocation4 [shape = 's32[1]{0}', space=sflag, size = 0x4, scoped, tag = 'scoped memory for tpu_custom_call.1']
    #allocation5 [shape = 'u8[65536]{0}', space=vmem, size = 0x10000, scoped, tag = 'input window, operand 1, single buffered']
    #allocation6 [shape = 's32[1]{0}', space=sflag, size = 0x4, scoped, tag = 'scoped memory for tpu_custom_call.1']
    #allocation7 [shape = 'u8[16384]{0}', space=vmem, size = 0x4000, scoped, tag = 'input window, operand 2, single buffered']
    #allocation8 [shape = 'u8[16384]{0}', space=vmem, size = 0x4000, scoped, tag = 'output window, operand 0, single buffered']
    %8 = vsyncpa [#allocation3], 0
    %9 = vsyncpa [#allocation6], 0
    %10 = vsyncpa [#allocation4], 0
    // Predicated region
    $region2: #{tpu_custom_call.1} parent=1 // pred_check
      _
    $region3: #{tpu_custom_call.1} parent=1 // pred_check_branch
      %12 = sbr.rel (0) target = $region5
    $region4: #{tpu_custom_call.1} parent=1 // pred_region
      %s14 = ssub.s32 512, 512
      %15 = vsyncadd [#allocation3], %s14
      %s16 = sshll.u32 [#allocation2], 4
      %s17 = int_to_ptr.vmem [resolvable:$true] %s16
      %22 = dma.hbm_to_vmem [thread:$0]  %s0, 512, %s17, [#allocation3], 128, 128, 8
    $region5: #{tpu_custom_call.1} parent=1 // pred_fallthru
      _
    // Predicated region
    $region6: #{tpu_custom_call.1} parent=1 // pred_check
      _
    $region7: #{tpu_custom_call.1} parent=1 // pred_check_branch
      %24 = sbr.rel (0) target = $region9
    $region8: #{tpu_custom_call.1} parent=1 // pred_region
      %s26 = ssub.s32 2048, 2048
      %27 = vsyncadd [#allocation6], %s26
      %s28 = sshll.u32 [#allocation5], 4
      %s29 = int_to_ptr.vmem [resolvable:$true] %s28
      %34 = dma.hbm_to_vmem [thread:$0]  %s1, 2048, %s29, [#allocation6], 128, 128, 8
    $region9: #{tpu_custom_call.1} parent=1 // pred_fallthru
      _
    // Predicated region
    $region10: #{tpu_custom_call.1} parent=1 // pred_check
      _
    $region11: #{tpu_custom_call.1} parent=1 // pred_check_branch
      %36 = sbr.rel (0) target = $region13
    $region12: #{tpu_custom_call.1} parent=1 // pred_region
      %s38 = ssub.s32 512, 512
      %39 = vsyncadd [#allocation6], %s38
      %s40 = sshll.u32 [#allocation7], 4
      %s41 = int_to_ptr.vmem [resolvable:$true] %s40
      %46 = dma.hbm_to_vmem [thread:$0]  %s2, 512, %s41, [#allocation6], 128, 128, 8
    $region13: #{tpu_custom_call.1} parent=1 // pred_fallthru
      _
    // Predicated region
    $region14: #{tpu_custom_call.1} parent=1 // pred_check
      _
    $region15: #{tpu_custom_call.1} parent=1 // pred_check_branch
      %48 = sbr.rel (0) target = $region17
    $region16: #{tpu_custom_call.1} parent=1 // pred_region
      %49 = dma.done [#allocation3], 512
    $region17: #{tpu_custom_call.1} parent=1 // pred_fallthru
      _
    // Predicated region
    $region18: #{tpu_custom_call.1} parent=1 // pred_check
      _
    $region19: #{tpu_custom_call.1} parent=1 // pred_check_branch
      %51 = sbr.rel (0) target = $region21
    $region20: #{tpu_custom_call.1} parent=1 // pred_region
      %52 = dma.done [#allocation6], 2048
    $region21: #{tpu_custom_call.1} parent=1 // pred_fallthru
      _
    // Predicated region
    $region22: #{tpu_custom_call.1} parent=1 // pred_check
      _
    $region23: #{tpu_custom_call.1} parent=1 // pred_check_branch
      %54 = sbr.rel (0) target = $region25
    $region24: #{tpu_custom_call.1} parent=1 // pred_region
      %55 = dma.done [#allocation6], 512
    $region25: #{tpu_custom_call.1} parent=1 // pred_fallthru
      _
    %v56 = vld [vmem:[#allocation2] sm:$0xff]
    %v57 = vld [vmem:[#allocation2 + $0x8] sm:$0xff]
    %v58 = vld [vmem:[#allocation2 + $0x10] sm:$0xff]
    %v59 = vld [vmem:[#allocation2 + $0x18] sm:$0xff]
    %v60 = vld [vmem:[#allocation5] sm:$0xff]
    %v61 = vld [vmem:[#allocation5 + $0x8] sm:$0xff]
    %v62 = vld [vmem:[#allocation5 + $0x10] sm:$0xff]
    %v63 = vld [vmem:[#allocation5 + $0x18] sm:$0xff]
    %v64 = vld [vmem:[#allocation5 + $0x20] sm:$0xff]
    %v65 = vld [vmem:[#allocation5 + $0x28] sm:$0xff]
    %v66 = vld [vmem:[#allocation5 + $0x30] sm:$0xff]
    %v67 = vld [vmem:[#allocation5 + $0x38] sm:$0xff]
    %v68 = vld [vmem:[#allocation5 + $0x40] sm:$0xff]
    %v69 = vld [vmem:[#allocation5 + $0x48] sm:$0xff]
    %v70 = vld [vmem:[#allocation5 + $0x50] sm:$0xff]
    %v71 = vld [vmem:[#allocation5 + $0x58] sm:$0xff]
    %v72 = vld [vmem:[#allocation5 + $0x60] sm:$0xff]
    %v73 = vld [vmem:[#allocation5 + $0x68] sm:$0xff]
    %v74 = vld [vmem:[#allocation5 + $0x70] sm:$0xff]
    %v75 = vld [vmem:[#allocation5 + $0x78] sm:$0xff]
    %v76 = vld [vmem:[#allocation7] sm:$0xff]
    %v77 = vld [vmem:[#allocation7 + $0x8] sm:$0xff]
    %v78 = vld [vmem:[#allocation7 + $0x10] sm:$0xff]
    %v79 = vld [vmem:[#allocation7 + $0x18] sm:$0xff]
    %80 = vmatprep.subr.mxu0 0.0
    %81 = vmatpush1.msra.mxu0 %v75
    %82 = vmatprep.subr.mxu0 0.0
    %83 = vmatpush1.msra.mxu0 %v74
    %84 = vmatprep.subr.mxu0 0.0
    %85 = vmatpush1.msra.mxu0 %v73
    %86 = vmatprep.subr.mxu0 0.0
    %87 = vmatpush1.msra.mxu0 %v72
    %88 = vmatprep.subr.mxu0 0.0
    %89 = vmatpush1.msra.mxu0 %v71
    %90 = vmatprep.subr.mxu0 0.0
    %91 = vmatpush1.msra.mxu0 %v70
    %92 = vmatprep.subr.mxu0 0.0
    %93 = vmatpush1.msra.mxu0 %v69
    %94 = vmatprep.subr.mxu0 0.0
    %95 = vmatpush1.msra.mxu0 %v68
    %96 = vmatprep.subr.mxu0 0.0
    %97 = vmatpush1.msra.mxu0 %v67
    %98 = vmatprep.subr.mxu0 0.0
    %99 = vmatpush1.msra.mxu0 %v66
    %100 = vmatprep.subr.mxu0 0.0
    %101 = vmatpush1.msra.mxu0 %v65
    %102 = vmatprep.subr.mxu0 0.0
    %103 = vmatpush1.msra.mxu0 %v64
    %104 = vmatprep.subr.mxu0 0.0
    %105 = vmatpush1.msra.mxu0 %v63
    %106 = vmatprep.subr.mxu0 0.0
    %107 = vmatpush1.msra.mxu0 %v62
    %108 = vmatprep.subr.mxu0 0.0
    %109 = vmatpush1.msra.mxu0 %v61
    %110 = vmatprep.subr.mxu0 0.0
    %111 = vmatpush1.msra.mxu0 %v60
    %112 = vmatprep.subr.mxu0 0.0
    %113 = vmatpush2.msra.mxu0 0.0
    %114 = vmatprep.subr.mxu0 0.0
    %115 = vmatpush2.msra.mxu0 0.0
    %116 = vmatprep.subr.mxu0 0.0
    %117 = vmatpush2.msra.mxu0 0.0
    %118 = vmatprep.subr.mxu0 0.0
    %119 = vmatpush2.msra.mxu0 0.0
    %120 = vmatprep.subr.mxu0 0.0
    %121 = vmatpush2.msra.mxu0 0.0
    %122 = vmatprep.subr.mxu0 0.0
    %123 = vmatpush2.msra.mxu0 0.0
    %124 = vmatprep.subr.mxu0 0.0
    %125 = vmatpush2.msra.mxu0 0.0
    %126 = vmatprep.subr.mxu0 0.0
    %127 = vmatpush2.msra.mxu0 0.0
    %128 = vmatprep.subr.mxu0 0.0
    %129 = vmatpush2.msra.mxu0 0.0
    %130 = vmatprep.subr.mxu0 0.0
    %131 = vmatpush2.msra.mxu0 0.0
    %132 = vmatprep.subr.mxu0 0.0
    %133 = vmatpush2.msra.mxu0 0.0
    %134 = vmatprep.subr.mxu0 0.0
    %135 = vmatpush2.msra.mxu0 0.0
    %136 = vmatprep.subr.mxu0 0.0
    %137 = vmatpush2.msra.mxu0 0.0
    %138 = vmatprep.subr.mxu0 0.0
    %139 = vmatpush2.msra.mxu0 0.0
    %140 = vmatprep.subr.mxu0 0.0
    %141 = vmatpush2.msra.mxu0 0.0
    %142 = vmatprep.subr.mxu0 0.0
    %143 = vmatpush2.msra.mxu0 0.0
    %144 = vmatprep.mubr.f32.mxu0 0.0
    %145 = vmatmul.mubr.f32.gmra.mxu0 %v56
    %v146 = vpop.f32.mrf.mxu0
    %v147 = vadd.f32 %v76, %v146
    %v148 = vpop.f32.mrf.mxu0
    %149 = vmatprep.mubr.f32.mxu0 0.0
    %150 = vmatmul.mubr.f32.gmra.mxu0 %v57
    %v151 = vpop.f32.mrf.mxu0
    %v152 = vadd.f32 %v77, %v151
    %v153 = vpop.f32.mrf.mxu0
    %154 = vmatprep.mubr.f32.mxu0 0.0
    %155 = vmatmul.mubr.f32.gmra.mxu0 %v58
    %v156 = vpop.f32.mrf.mxu0
    %v157 = vadd.f32 %v78, %v156
    %v158 = vpop.f32.mrf.mxu0
    %159 = vmatprep.mubr.f32.mxu0 0.0
    %160 = vmatmul.mubr.f32.gmra.mxu0 %v59
    %v161 = vpop.f32.mrf.mxu0
    %v162 = vadd.f32 %v79, %v161
    %v163 = vpop.f32.mrf.mxu0
    %164 = vdwg.mxu0
    %165 = vst [vmem:[#allocation8] sm:$0xff] %v147
    %166 = vst [vmem:[#allocation8 + $0x8] sm:$0xff] %v152
    %167 = vst [vmem:[#allocation8 + $0x10] sm:$0xff] %v157
    %168 = vst [vmem:[#allocation8 + $0x18] sm:$0xff] %v162
    // Predicated region
    $region26: #{tpu_custom_call.1} parent=1 // pred_check
      _
    $region27: #{tpu_custom_call.1} parent=1 // pred_check_branch
      %170 = sbr.rel (0) target = $region29
    $region28: #{tpu_custom_call.1} parent=1 // pred_region
      %s172 = ssub.s32 512, 512
      %173 = vsyncadd [#allocation4], %s172
      %s174 = sshll.u32 [#allocation8], 4
      %s175 = int_to_ptr.vmem [resolvable:$true] %s174
      %180 = dma.vmem_to_hbm [thread:$0]  %s175, 512, %s3, [#allocation4], 128, 128, 8
    $region29: #{tpu_custom_call.1} parent=1 // pred_fallthru
      _
    // Predicated region
    $region30: #{tpu_custom_call.1} parent=1 // pred_check
      _
    $region31: #{tpu_custom_call.1} parent=1 // pred_check_branch
      %182 = sbr.rel (0) target = $region33
    $region32: #{tpu_custom_call.1} parent=1 // pred_region
      %183 = dma.done [#allocation4], 512
    $region33: #{tpu_custom_call.1} parent=1 // pred_fallthru
      _
    %184 = vsyncpa [#allocation3], 1
    %185 = vsyncpa [#allocation6], 1
    %186 = vsyncpa [#allocation4], 1

</llo_original>
